<compile_context>
chip_gen: v7x
topology: tpu7x:2x2x1
jax: 0.10.0
libtpu: 0.0.40
codegen_flags: <defaults>
</compile_context>

<pallas_src>
import math
from functools import partial

import jax
import jax.numpy as jnp
from jax.experimental import pallas as pl
from jax.experimental.pallas import tpu as pltpu

_MIB = 1024 * 1024


def _device_defaults():
    """Per-generation tile sizes and VMEM limit."""
    try:
        vmem_cap = pltpu.get_tpu_info().vmem_capacity_bytes
    except Exception:
        vmem_cap = 128 * _MIB
    vmem_limit = max(32 * _MIB, int(vmem_cap * 0.75))  # 48 MiB v7x, 96 MiB v5e/v6e
    if vmem_cap <= 64 * _MIB:
        # v7x: half the VMEM -> halve query / row tiles to stay out of spills.
        return dict(row_tile=256, q_tile=128, kv_tile=512, vmem_limit=vmem_limit)
    return dict(row_tile=512, q_tile=256, kv_tile=512, vmem_limit=vmem_limit)


def _pick_tile(n, preferred):
    """Largest multiple-of-8 divisor of n that is <= preferred, else n itself."""
    t = min(preferred, n)
    t -= t % 8
    while t >= 8:
        if n % t == 0:
            return t
        t -= 8
    return n


# --------------------------- kernel 1: fused QKV projection ------------------

def _qkv_proj_kernel(q_scale, x_ref, wq_ref, wk_ref, wv_ref,
                     bq_ref, bk_ref, bv_ref, q_ref, k_ref, v_ref):
    x = x_ref[...]                                            # (tr, H) bf16
    # Three H-wide dots: peak live f32 is only (tr, H), and each store can
    # overlap the next matmul.
    q = jnp.dot(x, wq_ref[...], preferred_element_type=jnp.float32) + bq_ref[...]
    q_ref[...] = (q * q_scale).astype(q_ref.dtype)            # 1/sqrt(hd) folded in
    k = jnp.dot(x, wk_ref[...], preferred_element_type=jnp.float32) + bk_ref[...]
    k_ref[...] = k.astype(k_ref.dtype)
    v = jnp.dot(x, wv_ref[...], preferred_element_type=jnp.float32) + bv_ref[...]
    v_ref[...] = v.astype(v_ref.dtype)


def _qkv_projection(x2d, wq, wk, wv, bq, bk, bv, *, q_scale, row_tile,
                    vmem_limit, single_buffer_weights=True):
    R, H = x2d.shape
    tr = _pick_tile(R, row_tile)

    def resident(shape):
        # Constant index_map -> block stays resident in VMEM across the grid.
        # A single buffer suffices (double buffering a constant block is waste).
        index_map = lambda i: (0, 0)
        if single_buffer_weights:
            try:
                return pl.BlockSpec(shape, index_map, pipeline_mode=pl.Buffered(1))
            except TypeError:
                pass
        return pl.BlockSpec(shape, index_map)

    act_spec = pl.BlockSpec((tr, H), lambda i: (i, 0))
    return pl.pallas_call(
        partial(_qkv_proj_kernel, q_scale),
        grid=(R // tr,),
        in_specs=[act_spec,
                  resident((H, H)), resident((H, H)), resident((H, H)),
                  resident((1, H)), resident((1, H)), resident((1, H))],
        out_specs=(act_spec, act_spec, act_spec),
        out_shape=tuple(jax.ShapeDtypeStruct((R, H), jnp.bfloat16)
                        for _ in range(3)),
        compiler_params=pltpu.CompilerParams(
            dimension_semantics=("parallel",),
            vmem_limit_bytes=vmem_limit),
    )(x2d, wq, wk, wv, bq, bk, bv)


# --------------------------- kernel 2: flash-style attention -----------------

def _attention_kernel(num_heads, q_ref, k_ref, v_ref, mask_ref, o_ref,
                      m_sc, l_sc, acc_sc):
    tq, H = q_ref.shape[1], q_ref.shape[2]
    tk = k_ref.shape[1]
    hd = H // num_heads
    k_step = pl.program_id(2)

    @pl.when(k_step == 0)
    def _():
        m_sc[...] = jnp.full(m_sc.shape, -1e30, m_sc.dtype)
        l_sc[...] = jnp.zeros(l_sc.shape, l_sc.dtype)
        acc_sc[...] = jnp.zeros(acc_sc.shape, acc_sc.dtype)

    # Q/K/V arrive lane-dense on H; the head split happens in-register
    # (a 4-D hd<128-lane DMA layout would be worse).
    q = q_ref[0].reshape(tq, num_heads, hd)                   # bf16, pre-scaled
    k = k_ref[0].reshape(tk, num_heads, hd)                   # bf16
    v = v_ref[0].reshape(tk, num_heads, hd)                   # bf16
    mask = mask_ref[0]                                        # (1, tk) f32 additive

    # Head-batched scores for this KV tile: (nh, tq, tk), f32 accumulation.
    s = jnp.einsum('qhd,khd->hqk', q, k, preferred_element_type=jnp.float32)
    s = s + mask[None, :, :]

    # Online softmax update (all statistics in f32).
    m_prev = m_sc[...]
    m_new = jnp.maximum(m_prev, jnp.max(s, axis=-1, keepdims=True))
    alpha = jnp.exp(m_prev - m_new)
    p = jnp.exp(s - m_new)
    l_sc[...] = alpha * l_sc[...] + jnp.sum(p, axis=-1, keepdims=True)
    acc_sc[...] = alpha * acc_sc[...] + jnp.einsum(
        'hqk,khd->hqd', p.astype(jnp.bfloat16), v,
        preferred_element_type=jnp.float32)
    m_sc[...] = m_new

    @pl.when(k_step == pl.num_programs(2) - 1)
    def _():
        ctx = acc_sc[...] * pl.reciprocal(l_sc[...], approx=True)  # (nh, tq, hd)
        ctx = jnp.transpose(ctx, (1, 0, 2)).reshape(tq, H)         # once, not per step
        o_ref[0] = ctx.astype(o_ref.dtype)


def _attention(q, k, v, mask, num_heads, *, q_tile, kv_tile, vmem_limit,
               out_dtype):
    B, S, H = q.shape
    hd = H // num_heads
    tq = _pick_tile(S, q_tile)
    tk = _pick_tile(S, kv_tile)
    grid = (B, S // tq, S // tk)

    return pl.pallas_call(
        partial(_attention_kernel, num_heads),
        grid=grid,
        in_specs=[pl.BlockSpec((1, tq, H), lambda b, qi, ki: (b, qi, 0)),  # Q tile
                  pl.BlockSpec((1, tk, H), lambda b, qi, ki: (b, ki, 0)),  # K tile
                  pl.BlockSpec((1, tk, H), lambda b, qi, ki: (b, ki, 0)),  # V tile
                  pl.BlockSpec((1, 1, tk), lambda b, qi, ki: (b, 0, ki))],  # mask
        out_specs=pl.BlockSpec((1, tq, H), lambda b, qi, ki: (b, qi, 0)),
        out_shape=jax.ShapeDtypeStruct((B, S, H), out_dtype),
        scratch_shapes=[pltpu.VMEM((num_heads, tq, 1), jnp.float32),   # running max
                        pltpu.VMEM((num_heads, tq, 1), jnp.float32),   # running sum
                        pltpu.VMEM((num_heads, tq, hd), jnp.float32)],  # f32 acc
        compiler_params=pltpu.CompilerParams(
            dimension_semantics=("parallel", "parallel", "arbitrary"),
            vmem_limit_bytes=vmem_limit),
    )(q, k, v, mask)


# --------------------------- wrapper ------------------------------------------

def bert_self_attention(hidden_states, attention_mask, params, num_heads, *,
                        row_tile=None, q_tile=None, kv_tile=None,
                        out_dtype=jnp.bfloat16):
    """context_layer = BertSelfAttention(hidden_states, attention_mask)[0]."""
    B, S, H = hidden_states.shape
    hd = H // num_heads
    q_scale = 1.0 / math.sqrt(hd)

    cfg = _device_defaults()
    row_tile = row_tile or cfg['row_tile']
    q_tile = q_tile or cfg['q_tile']
    kv_tile = kv_tile or cfg['kv_tile']
    vmem_limit = cfg['vmem_limit']

    # bf16 weights & activations (f32 MXU accumulation); Linear with
    # W_jax = W_torch.T.  Activations are cast once here, not per tile.
    wq = params['wq'].astype(jnp.bfloat16)
    wk = params['wk'].astype(jnp.bfloat16)
    wv = params['wv'].astype(jnp.bfloat16)
    bq = params['bq'].reshape(1, H).astype(jnp.float32)
    bk = params['bk'].reshape(1, H).astype(jnp.float32)
    bv = params['bv'].reshape(1, H).astype(jnp.float32)
    x2d = hidden_states.reshape(B * S, H).astype(jnp.bfloat16)

    try:
        q2d, k2d, v2d = _qkv_projection(
            x2d, wq, wk, wv, bq, bk, bv, q_scale=q_scale, row_tile=row_tile,
            vmem_limit=vmem_limit, single_buffer_weights=True)
    except Exception:
        # Fallback if pipeline_mode=pl.Buffered(1) is unsupported by this jax.
        q2d, k2d, v2d = _qkv_projection(
            x2d, wq, wk, wv, bq, bk, bv, q_scale=q_scale, row_tile=row_tile,
            vmem_limit=vmem_limit, single_buffer_weights=False)

    q = q2d.reshape(B, S, H)
    k = k2d.reshape(B, S, H)
    v = v2d.reshape(B, S, H)

    if attention_mask is None:
        mask = jnp.zeros((B, 1, S), jnp.float32)
    else:
        mask = attention_mask.reshape(B, 1, S).astype(jnp.float32)

    return _attention(q, k, v, mask, num_heads, q_tile=q_tile, kv_tile=kv_tile,
                      vmem_limit=vmem_limit, out_dtype=out_dtype)


# --------------------------- pure-JAX reference (f32) ------------------------

def _reference(hidden_states, attention_mask, params, num_heads):
    B, S, H = hidden_states.shape
    hd = H // num_heads
    q = hidden_states @ params['wq'] + params['bq']
    k = hidden_states @ params['wk'] + params['bk']
    v = hidden_states @ params['wv'] + params['bv']
    q = q.reshape(B, S, num_heads, hd).transpose(0, 2, 1, 3)
    k = k.reshape(B, S, num_heads, hd).transpose(0, 2, 1, 3)
    v = v.reshape(B, S, num_heads, hd).transpose(0, 2, 1, 3)
    s = jnp.einsum('bhqd,bhkd->bhqk', q, k) / math.sqrt(hd)
    s = s + attention_mask[:, :, None, :]                 # (B,1,1,S) broadcast
    p = jax.nn.softmax(s, axis=-1)
    ctx = jnp.einsum('bhqk,bhkd->bhqd', p, v)
    return ctx.transpose(0, 2, 1, 3).reshape(B, S, H)


if __name__ == "__main__":
    # small config: batch=2, seq=8, hidden=32, heads=4
    B, S, H, NUM_HEADS = 2, 8, 32, 4
    std = 0.02

    key = jax.random.PRNGKey(0)
    kx, kq, kk, kv, kbq, kbk, kbv = jax.random.split(key, 7)
    hidden_states = jax.random.normal(kx, (B, S, H), jnp.float32)
    params = {
        'wq': jax.random.normal(kq, (H, H), jnp.float32) * std,
        'wk': jax.random.normal(kk, (H, H), jnp.float32) * std,
        'wv': jax.random.normal(kv, (H, H), jnp.float32) * std,
        'bq': jax.random.normal(kbq, (1, H), jnp.float32) * std,
        'bk': jax.random.normal(kbk, (1, H), jnp.float32) * std,
        'bv': jax.random.normal(kbv, (1, H), jnp.float32) * std,
    }

    # extended additive attention mask (B, 1, S): 0 attended, -10000 masked
    valid_len = jnp.array([S, S - 2])                     # mask last 2 of batch 1
    pos = jnp.arange(S)[None, :]
    attention_mask = jnp.where(pos < valid_len[:, None], 0.0, -10000.0)
    attention_mask = attention_mask.astype(jnp.float32)[:, None, :]

    out = bert_self_attention(hidden_states, attention_mask, params, NUM_HEADS)
    out = jax.block_until_ready(out)

    ref = _reference(hidden_states, attention_mask, params, NUM_HEADS)
    out_f32 = out.astype(jnp.float32)
    assert out.shape == (B, S, H)
    assert bool(jnp.all(jnp.isfinite(out_f32)))
    # bf16 matmul operands / bf16 output vs f32 reference -> small delta expected
    assert bool(jnp.allclose(out_f32, ref, atol=2e-2, rtol=2e-2)), \
        float(jnp.max(jnp.abs(out_f32 - ref)))
    print("KERNEL_OK")
</pallas_src>

<mosaic_0001>
module attributes {stable_mosaic.version = 11 : i64} {
  func.func @_qkv_proj_kernel(%arg0: i32, %arg1: memref<16x32xbf16, #tpu.memory_space<vmem>>, %arg2: memref<32x32xbf16, #tpu.memory_space<vmem>>, %arg3: memref<32x32xbf16, #tpu.memory_space<vmem>>, %arg4: memref<32x32xbf16, #tpu.memory_space<vmem>>, %arg5: memref<1x32xf32, #tpu.memory_space<vmem>>, %arg6: memref<1x32xf32, #tpu.memory_space<vmem>>, %arg7: memref<1x32xf32, #tpu.memory_space<vmem>>, %arg8: memref<16x32xbf16, #tpu.memory_space<vmem>>, %arg9: memref<16x32xbf16, #tpu.memory_space<vmem>>, %arg10: memref<16x32xbf16, #tpu.memory_space<vmem>>) attributes {dimension_semantics = [#tpu.dimension_semantics<parallel>], iteration_bounds = array<i64: 1>, scalar_prefetch = 0 : i64, scratch_operands = 0 : i64, tpu.core_type = #tpu.core_type<tc>, window_params = [{transform_indices = @transform_0, window_bounds = array<i64: 16, 32>}, {pipeline_mode = #tpu.pipeline_mode<synchronous>, transform_indices = @transform_1, window_bounds = array<i64: 32, 32>}, {pipeline_mode = #tpu.pipeline_mode<synchronous>, transform_indices = @transform_2, window_bounds = array<i64: 32, 32>}, {pipeline_mode = #tpu.pipeline_mode<synchronous>, transform_indices = @transform_3, window_bounds = array<i64: 32, 32>}, {pipeline_mode = #tpu.pipeline_mode<synchronous>, transform_indices = @transform_4, window_bounds = array<i64: 1, 32>}, {pipeline_mode = #tpu.pipeline_mode<synchronous>, transform_indices = @transform_5, window_bounds = array<i64: 1, 32>}, {pipeline_mode = #tpu.pipeline_mode<synchronous>, transform_indices = @transform_6, window_bounds = array<i64: 1, 32>}, {transform_indices = @transform_7, window_bounds = array<i64: 16, 32>}, {transform_indices = @transform_8, window_bounds = array<i64: 16, 32>}, {transform_indices = @transform_9, window_bounds = array<i64: 16, 32>}]} {
    %c0 = arith.constant 0 : index
    %c0_0 = arith.constant 0 : index
    %0 = vector.load %arg1[%c0, %c0_0] : memref<16x32xbf16, #tpu.memory_space<vmem>>, vector<16x32xbf16>
    %c0_1 = arith.constant 0 : index
    %c0_2 = arith.constant 0 : index
    %1 = vector.load %arg2[%c0_1, %c0_2] : memref<32x32xbf16, #tpu.memory_space<vmem>>, vector<32x32xbf16>
    %cst = arith.constant dense<0.000000e+00> : vector<16x32xf32>
    %2 = tpu.matmul %0, %1, %cst {dimension_numbers = #tpu.dot_dimension_numbers<[1], [0], [0], [1], [0, 0, 1, 1], [], []>} : vector<16x32xbf16>, vector<32x32xbf16>, vector<16x32xf32> -> vector<16x32xf32>
    %c0_3 = arith.constant 0 : index
    %c0_4 = arith.constant 0 : index
    %3 = vector.load %arg5[%c0_3, %c0_4] : memref<1x32xf32, #tpu.memory_space<vmem>>, vector<1x32xf32>
    %4 = vector.broadcast %3 : vector<1x32xf32> to vector<16x32xf32>
    %5 = arith.addf %2, %4 : vector<16x32xf32>
    %cst_5 = arith.constant 0.353553385 : f32
    %6 = vector.broadcast %cst_5 : f32 to vector<16x32xf32>
    %7 = arith.mulf %5, %6 : vector<16x32xf32>
    %8 = arith.truncf %7 : vector<16x32xf32> to vector<16x32xbf16>
    %c0_6 = arith.constant 0 : index
    %c0_7 = arith.constant 0 : index
    %9 = vector.load %arg8[%c0_6, %c0_7] : memref<16x32xbf16, #tpu.memory_space<vmem>>, vector<16x32xbf16>
    tpu.vector_store %arg8[%c0_6, %c0_7], %8 {strides = array<i32>} : memref<16x32xbf16, #tpu.memory_space<vmem>>, vector<16x32xbf16>,
    %c0_8 = arith.constant 0 : index
    %c0_9 = arith.constant 0 : index
    %10 = vector.load %arg3[%c0_8, %c0_9] : memref<32x32xbf16, #tpu.memory_space<vmem>>, vector<32x32xbf16>
    %cst_10 = arith.constant dense<0.000000e+00> : vector<16x32xf32>
    %11 = tpu.matmul %0, %10, %cst_10 {dimension_numbers = #tpu.dot_dimension_numbers<[1], [0], [0], [1], [0, 0, 1, 1], [], []>} : vector<16x32xbf16>, vector<32x32xbf16>, vector<16x32xf32> -> vector<16x32xf32>
    %c0_11 = arith.constant 0 : index
    %c0_12 = arith.constant 0 : index
    %12 = vector.load %arg6[%c0_11, %c0_12] : memref<1x32xf32, #tpu.memory_space<vmem>>, vector<1x32xf32>
    %13 = vector.broadcast %12 : vector<1x32xf32> to vector<16x32xf32>
    %14 = arith.addf %11, %13 : vector<16x32xf32>
    %15 = arith.truncf %14 : vector<16x32xf32> to vector<16x32xbf16>
    %c0_13 = arith.constant 0 : index
    %c0_14 = arith.constant 0 : index
    %16 = vector.load %arg9[%c0_13, %c0_14] : memref<16x32xbf16, #tpu.memory_space<vmem>>, vector<16x32xbf16>
    tpu.vector_store %arg9[%c0_13, %c0_14], %15 {strides = array<i32>} : memref<16x32xbf16, #tpu.memory_space<vmem>>, vector<16x32xbf16>,
    %c0_15 = arith.constant 0 : index
    %c0_16 = arith.constant 0 : index
    %17 = vector.load %arg4[%c0_15, %c0_16] : memref<32x32xbf16, #tpu.memory_space<vmem>>, vector<32x32xbf16>
    %cst_17 = arith.constant dense<0.000000e+00> : vector<16x32xf32>
    %18 = tpu.matmul %0, %17, %cst_17 {dimension_numbers = #tpu.dot_dimension_numbers<[1], [0], [0], [1], [0, 0, 1, 1], [], []>} : vector<16x32xbf16>, vector<32x32xbf16>, vector<16x32xf32> -> vector<16x32xf32>
    %c0_18 = arith.constant 0 : index
    %c0_19 = arith.constant 0 : index
    %19 = vector.load %arg7[%c0_18, %c0_19] : memref<1x32xf32, #tpu.memory_space<vmem>>, vector<1x32xf32>
    %20 = vector.broadcast %19 : vector<1x32xf32> to vector<16x32xf32>
    %21 = arith.addf %18, %20 : vector<16x32xf32>
    %22 = arith.truncf %21 : vector<16x32xf32> to vector<16x32xbf16>
    %c0_20 = arith.constant 0 : index
    %c0_21 = arith.constant 0 : index
    %23 = vector.load %arg10[%c0_20, %c0_21] : memref<16x32xbf16, #tpu.memory_space<vmem>>, vector<16x32xbf16>
    tpu.vector_store %arg10[%c0_20, %c0_21], %22 {strides = array<i32>} : memref<16x32xbf16, #tpu.memory_space<vmem>>, vector<16x32xbf16>,
    return
  }
  func.func @transform_0(%arg0: i32) -> (i32, i32) {
    %c0_i32 = arith.constant 0 : i32
    %c0_i32_0 = arith.constant 0 : i32
    return %arg0, %c0_i32 : i32, i32
  }
  func.func @transform_1(%arg0: i32) -> (i32, i32) {
    %c0_i32 = arith.constant 0 : i32
    %c0_i32_0 = arith.constant 0 : i32
    %c0_i32_1 = arith.constant 0 : i32
    return %c0_i32, %c0_i32_0 : i32, i32
  }
  func.func @transform_2(%arg0: i32) -> (i32, i32) {
    %c0_i32 = arith.constant 0 : i32
    %c0_i32_0 = arith.constant 0 : i32
    %c0_i32_1 = arith.constant 0 : i32
    return %c0_i32, %c0_i32_0 : i32, i32
  }
  func.func @transform_3(%arg0: i32) -> (i32, i32) {
    %c0_i32 = arith.constant 0 : i32
    %c0_i32_0 = arith.constant 0 : i32
    %c0_i32_1 = arith.constant 0 : i32
    return %c0_i32, %c0_i32_0 : i32, i32
  }
  func.func @transform_4(%arg0: i32) -> (i32, i32) {
    %c0_i32 = arith.constant 0 : i32
    %c0_i32_0 = arith.constant 0 : i32
    %c0_i32_1 = arith.constant 0 : i32
    return %c0_i32, %c0_i32_0 : i32, i32
  }
  func.func @transform_5(%arg0: i32) -> (i32, i32) {
    %c0_i32 = arith.constant 0 : i32
    %c0_i32_0 = arith.constant 0 : i32
    %c0_i32_1 = arith.constant 0 : i32
    return %c0_i32, %c0_i32_0 : i32, i32
  }
  func.func @transform_6(%arg0: i32) -> (i32, i32) {
    %c0_i32 = arith.constant 0 : i32
    %c0_i32_0 = arith.constant 0 : i32
    %c0_i32_1 = arith.constant 0 : i32
    return %c0_i32, %c0_i32_0 : i32, i32
  }
  func.func @transform_7(%arg0: i32) -> (i32, i32) {
    %c0_i32 = arith.constant 0 : i32
    %c0_i32_0 = arith.constant 0 : i32
    return %arg0, %c0_i32 : i32, i32
  }
  func.func @transform_8(%arg0: i32) -> (i32, i32) {
    %c0_i32 = arith.constant 0 : i32
    %c0_i32_0 = arith.constant 0 : i32
    return %arg0, %c0_i32 : i32, i32
  }
  func.func @transform_9(%arg0: i32) -> (i32, i32) {
    %c0_i32 = arith.constant 0 : i32
    %c0_i32_0 = arith.constant 0 : i32
    return %arg0, %c0_i32 : i32, i32
  }
}

module attributes {stable_mosaic.version = 11 : i64} {
  func.func @_qkv_proj_kernel(%arg0: i32, %arg1: memref<16x32xbf16, #tpu.memory_space<vmem>>, %arg2: memref<32x32xbf16, #tpu.memory_space<vmem>>, %arg3: memref<32x32xbf16, #tpu.memory_space<vmem>>, %arg4: memref<32x32xbf16, #tpu.memory_space<vmem>>, %arg5: memref<1x32xf32, #tpu.memory_space<vmem>>, %arg6: memref<1x32xf32, #tpu.memory_space<vmem>>, %arg7: memref<1x32xf32, #tpu.memory_space<vmem>>, %arg8: memref<16x32xbf16, #tpu.memory_space<vmem>>, %arg9: memref<16x32xbf16, #tpu.memory_space<vmem>>, %arg10: memref<16x32xbf16, #tpu.memory_space<vmem>>) attributes {dimension_semantics = [#tpu.dimension_semantics<parallel>], iteration_bounds = array<i64: 1>, scalar_prefetch = 0 : i64, scratch_operands = 0 : i64, tpu.core_type = #tpu.core_type<tc>, window_params = [{transform_indices = @transform_0, window_bounds = array<i64: 16, 32>}, {pipeline_mode = #tpu.pipeline_mode<synchronous>, transform_indices = @transform_1, window_bounds = array<i64: 32, 32>}, {pipeline_mode = #tpu.pipeline_mode<synchronous>, transform_indices = @transform_2, window_bounds = array<i64: 32, 32>}, {pipeline_mode = #tpu.pipeline_mode<synchronous>, transform_indices = @transform_3, window_bounds = array<i64: 32, 32>}, {pipeline_mode = #tpu.pipeline_mode<synchronous>, transform_indices = @transform_4, window_bounds = array<i64: 1, 32>}, {pipeline_mode = #tpu.pipeline_mode<synchronous>, transform_indices = @transform_5, window_bounds = array<i64: 1, 32>}, {pipeline_mode = #tpu.pipeline_mode<synchronous>, transform_indices = @transform_6, window_bounds = array<i64: 1, 32>}, {transform_indices = @transform_7, window_bounds = array<i64: 16, 32>}, {transform_indices = @transform_8, window_bounds = array<i64: 16, 32>}, {transform_indices = @transform_9, window_bounds = array<i64: 16, 32>}]} {
    %c0 = arith.constant 0 : index
    %c0_0 = arith.constant 0 : index
    %0 = vector.load %arg1[%c0, %c0_0] : memref<16x32xbf16, #tpu.memory_space<vmem>>, vector<16x32xbf16>
    %c0_1 = arith.constant 0 : index
    %c0_2 = arith.constant 0 : index
    %1 = vector.load %arg2[%c0_1, %c0_2] : memref<32x32xbf16, #tpu.memory_space<vmem>>, vector<32x32xbf16>
    %cst = arith.constant dense<0.000000e+00> : vector<16x32xf32>
    %2 = tpu.matmul %0, %1, %cst {dimension_numbers = #tpu.dot_dimension_numbers<[1], [0], [0], [1], [0, 0, 1, 1], [], []>} : vector<16x32xbf16>, vector<32x32xbf16>, vector<16x32xf32> -> vector<16x32xf32>
    %c0_3 = arith.constant 0 : index
    %c0_4 = arith.constant 0 : index
    %3 = vector.load %arg5[%c0_3, %c0_4] : memref<1x32xf32, #tpu.memory_space<vmem>>, vector<1x32xf32>
    %4 = vector.broadcast %3 : vector<1x32xf32> to vector<16x32xf32>
    %5 = arith.addf %2, %4 : vector<16x32xf32>
    %cst_5 = arith.constant 0.353553385 : f32
    %6 = vector.broadcast %cst_5 : f32 to vector<16x32xf32>
    %7 = arith.mulf %5, %6 : vector<16x32xf32>
    %8 = arith.truncf %7 : vector<16x32xf32> to vector<16x32xbf16>
    %c0_6 = arith.constant 0 : index
    %c0_7 = arith.constant 0 : index
    %9 = vector.load %arg8[%c0_6, %c0_7] : memref<16x32xbf16, #tpu.memory_space<vmem>>, vector<16x32xbf16>
    tpu.vector_store %arg8[%c0_6, %c0_7], %8 {strides = array<i32>} : memref<16x32xbf16, #tpu.memory_space<vmem>>, vector<16x32xbf16>,
    %c0_8 = arith.constant 0 : index
    %c0_9 = arith.constant 0 : index
    %10 = vector.load %arg3[%c0_8, %c0_9] : memref<32x32xbf16, #tpu.memory_space<vmem>>, vector<32x32xbf16>
    %cst_10 = arith.constant dense<0.000000e+00> : vector<16x32xf32>
    %11 = tpu.matmul %0, %10, %cst_10 {dimension_numbers = #tpu.dot_dimension_numbers<[1], [0], [0], [1], [0, 0, 1, 1], [], []>} : vector<16x32xbf16>, vector<32x32xbf16>, vector<16x32xf32> -> vector<16x32xf32>
    %c0_11 = arith.constant 0 : index
    %c0_12 = arith.constant 0 : index
    %12 = vector.load %arg6[%c0_11, %c0_12] : memref<1x32xf32, #tpu.memory_space<vmem>>, vector<1x32xf32>
    %13 = vector.broadcast %12 : vector<1x32xf32> to vector<16x32xf32>
    %14 = arith.addf %11, %13 : vector<16x32xf32>
    %15 = arith.truncf %14 : vector<16x32xf32> to vector<16x32xbf16>
    %c0_13 = arith.constant 0 : index
    %c0_14 = arith.constant 0 : index
    %16 = vector.load %arg9[%c0_13, %c0_14] : memref<16x32xbf16, #tpu.memory_space<vmem>>, vector<16x32xbf16>
    tpu.vector_store %arg9[%c0_13, %c0_14], %15 {strides = array<i32>} : memref<16x32xbf16, #tpu.memory_space<vmem>>, vector<16x32xbf16>,
    %c0_15 = arith.constant 0 : index
    %c0_16 = arith.constant 0 : index
    %17 = vector.load %arg4[%c0_15, %c0_16] : memref<32x32xbf16, #tpu.memory_space<vmem>>, vector<32x32xbf16>
    %cst_17 = arith.constant dense<0.000000e+00> : vector<16x32xf32>
    %18 = tpu.matmul %0, %17, %cst_17 {dimension_numbers = #tpu.dot_dimension_numbers<[1], [0], [0], [1], [0, 0, 1, 1], [], []>} : vector<16x32xbf16>, vector<32x32xbf16>, vector<16x32xf32> -> vector<16x32xf32>
    %c0_18 = arith.constant 0 : index
    %c0_19 = arith.constant 0 : index
    %19 = vector.load %arg7[%c0_18, %c0_19] : memref<1x32xf32, #tpu.memory_space<vmem>>, vector<1x32xf32>
    %20 = vector.broadcast %19 : vector<1x32xf32> to vector<16x32xf32>
    %21 = arith.addf %18, %20 : vector<16x32xf32>
    %22 = arith.truncf %21 : vector<16x32xf32> to vector<16x32xbf16>
    %c0_20 = arith.constant 0 : index
    %c0_21 = arith.constant 0 : index
    %23 = vector.load %arg10[%c0_20, %c0_21] : memref<16x32xbf16, #tpu.memory_space<vmem>>, vector<16x32xbf16>
    tpu.vector_store %arg10[%c0_20, %c0_21], %22 {strides = array<i32>} : memref<16x32xbf16, #tpu.memory_space<vmem>>, vector<16x32xbf16>,
    return
  }
  func.func @transform_0(%arg0: i32) -> (i32, i32) {
    %c0_i32 = arith.constant 0 : i32
    %c0_i32_0 = arith.constant 0 : i32
    return %arg0, %c0_i32 : i32, i32
  }
  func.func @transform_1(%arg0: i32) -> (i32, i32) {
    %c0_i32 = arith.constant 0 : i32
    %c0_i32_0 = arith.constant 0 : i32
    %c0_i32_1 = arith.constant 0 : i32
    return %c0_i32, %c0_i32_0 : i32, i32
  }
  func.func @transform_2(%arg0: i32) -> (i32, i32) {
    %c0_i32 = arith.constant 0 : i32
    %c0_i32_0 = arith.constant 0 : i32
    %c0_i32_1 = arith.constant 0 : i32
    return %c0_i32, %c0_i32_0 : i32, i32
  }
  func.func @transform_3(%arg0: i32) -> (i32, i32) {
    %c0_i32 = arith.constant 0 : i32
    %c0_i32_0 = arith.constant 0 : i32
    %c0_i32_1 = arith.constant 0 : i32
    return %c0_i32, %c0_i32_0 : i32, i32
  }
  func.func @transform_4(%arg0: i32) -> (i32, i32) {
    %c0_i32 = arith.constant 0 : i32
    %c0_i32_0 = arith.constant 0 : i32
    %c0_i32_1 = arith.constant 0 : i32
    return %c0_i32, %c0_i32_0 : i32, i32
  }
  func.func @transform_5(%arg0: i32) -> (i32, i32) {
    %c0_i32 = arith.constant 0 : i32
    %c0_i32_0 = arith.constant 0 : i32
    %c0_i32_1 = arith.constant 0 : i32
    return %c0_i32, %c0_i32_0 : i32, i32
  }
  func.func @transform_6(%arg0: i32) -> (i32, i32) {
    %c0_i32 = arith.constant 0 : i32
    %c0_i32_0 = arith.constant 0 : i32
    %c0_i32_1 = arith.constant 0 : i32
    return %c0_i32, %c0_i32_0 : i32, i32
  }
  func.func @transform_7(%arg0: i32) -> (i32, i32) {
    %c0_i32 = arith.constant 0 : i32
    %c0_i32_0 = arith.constant 0 : i32
    return %arg0, %c0_i32 : i32, i32
  }
  func.func @transform_8(%arg0: i32) -> (i32, i32) {
    %c0_i32 = arith.constant 0 : i32
    %c0_i32_0 = arith.constant 0 : i32
    return %arg0, %c0_i32 : i32, i32
  }
  func.func @transform_9(%arg0: i32) -> (i32, i32) {
    %c0_i32 = arith.constant 0 : i32
    %c0_i32_0 = arith.constant 0 : i32
    return %arg0, %c0_i32 : i32, i32
  }
}

</mosaic_0001>

<llo_original>
// kernel: tpu_custom_call.1
$region0: #{tpu_custom_call.1}
  #allocation0 [shape = 'u32[]', space=smem, size = 0x4, offset = 0x4, fixed_abs, tag = 'smem constant byte address 0x4 - core index']
  #allocation1 [shape = 'u32[144,128]{1,0:T(1,128)}', space=vmem, size = 0x12000, scoped, tag = 'internal scratch']
  %s0 = inlined_call_operand.hbm [shape: bf16[16,32], index: 0, kind: input, shape index: {}]
  %s1 = inlined_call_operand.hbm [shape: bf16[32,32], index: 1, kind: input, shape index: {}]
  %s2 = inlined_call_operand.hbm [shape: bf16[32,32], index: 2, kind: input, shape index: {}]
  %s3 = inlined_call_operand.hbm [shape: bf16[32,32], index: 3, kind: input, shape index: {}]
  %s4 = inlined_call_operand.hbm [shape: f32[1,32], index: 4, kind: input, shape index: {}]
  %s5 = inlined_call_operand.hbm [shape: f32[1,32], index: 5, kind: input, shape index: {}]
  %s6 = inlined_call_operand.hbm [shape: f32[1,32], index: 6, kind: input, shape index: {}]
  %s7 = inlined_call_operand.hbm [shape: bf16[16,32], index: 7, kind: output, shape index: {0}]
  %s8 = inlined_call_operand.hbm [shape: bf16[16,32], index: 8, kind: output, shape index: {1}]
  %s9 = inlined_call_operand.hbm [shape: bf16[16,32], index: 9, kind: output, shape index: {2}]
  %10 = xla_tuple %s7, %s8, %s9
  %s11 = sld [smem:[#allocation0]]
  $region82: #{tpu_custom_call.1} parent=0
    _
  %s13 = ssub.s32 1, %s11
  %s14 = scalar_select 0, %s13, %s11
  $region1: #{tpu_custom_call.1} parent=0
    #allocation2 [shape = 'u8[4096]{0}', space=vmem, size = 0x1000, scoped, tag = 'input window, operand 0, single buffered']
    #allocation3 [shape = 's32[1]{0}', space=sflag, size = 0x4, scoped, tag = 'scoped memory for tpu_custom_call.1']
    #allocation4 [shape = 's32[1]{0}', space=sflag, size = 0x4, scoped, tag = 'scoped memory for tpu_custom_call.1']
    #allocation5 [shape = 'u8[8192]{0}', space=vmem, size = 0x2000, scoped, tag = 'input window, operand 1, single buffered']
    #allocation6 [shape = 's32[1]{0}', space=sflag, size = 0x4, scoped, tag = 'scoped memory for tpu_custom_call.1']
    #allocation7 [shape = 'u8[8192]{0}', space=vmem, size = 0x2000, scoped, tag = 'input window, operand 2, single buffered']
    #allocation8 [shape = 'u8[8192]{0}', space=vmem, size = 0x2000, scoped, tag = 'input window, operand 3, single buffered']
    #allocation9 [shape = 's32[1]{0}', space=sflag, size = 0x4, scoped, tag = 'scoped memory for tpu_custom_call.1']
    #allocation10 [shape = 'u8[512]{0}', space=vmem, size = 0x400, scoped, tag = 'input window, operand 4, single buffered']
    #allocation11 [shape = 'u8[512]{0}', space=vmem, size = 0x400, scoped, tag = 'input window, operand 5, single buffered']
    #allocation12 [shape = 's32[1]{0}', space=sflag, size = 0x4, scoped, tag = 'scoped memory for tpu_custom_call.1']
    #allocation13 [shape = 'u8[512]{0}', space=vmem, size = 0x400, scoped, tag = 'input window, operand 6, single buffered']
    #allocation14 [shape = 'u8[4096]{0}', space=vmem, size = 0x1000, scoped, tag = 'output window, operand 0, single buffered']
    #allocation15 [shape = 'u8[4096]{0}', space=vmem, size = 0x1000, scoped, tag = 'output window, operand 1, single buffered']
    #allocation16 [shape = 's32[1]{0}', space=sflag, size = 0x4, scoped, tag = 'scoped memory for tpu_custom_call.1']
    #allocation17 [shape = 'u8[4096]{0}', space=vmem, size = 0x1000, scoped, tag = 'output window, operand 2, single buffered']
    %15 = vsyncpa [#allocation3], 0
    %16 = vsyncpa [#allocation6], 0
    %17 = vsyncpa [#allocation9], 0
    %18 = vsyncpa [#allocation12], 0
    %19 = vsyncpa [#allocation4], 0
    %20 = vsyncpa [#allocation16], 0
    // Predicated region
    $region2: #{tpu_custom_call.1} parent=1 // pred_check
      _
    $region3: #{tpu_custom_call.1} parent=1 // pred_check_branch
      %22 = sbr.rel (0) target = $region5
    $region4: #{tpu_custom_call.1} parent=1 // pred_region
      %s24 = ssub.s32 128, 128
      %25 = vsyncadd [#allocation3], %s24
      %s26 = sshll.u32 [#allocation2], 4
      %s27 = int_to_ptr.vmem [resolvable:$true] %s26
      %32 = dma.hbm_to_vmem [thread:$0]  %s0, 128, %s27, [#allocation3], 64, 64, 4
    $region5: #{tpu_custom_call.1} parent=1 // pred_fallthru
      _
    // Predicated region
    $region6: #{tpu_custom_call.1} parent=1 // pred_check
      _
    $region7: #{tpu_custom_call.1} parent=1 // pred_check_branch
      %34 = sbr.rel (0) target = $region9
    $region8: #{tpu_custom_call.1} parent=1 // pred_region
      %s36 = ssub.s32 256, 256
      %37 = vsyncadd [#allocation6], %s36
      %s38 = sshll.u32 [#allocation5], 4
      %s39 = int_to_ptr.vmem [resolvable:$true] %s38
      %44 = dma.hbm_to_vmem [thread:$0]  %s1, 256, %s39, [#allocation6], 64, 64, 4
    $region9: #{tpu_custom_call.1} parent=1 // pred_fallthru
      _
    // Predicated region
    $region10: #{tpu_custom_call.1} parent=1 // pred_check
      _
    $region11: #{tpu_custom_call.1} parent=1 // pred_check_branch
      %46 = sbr.rel (0) target = $region13
    $region12: #{tpu_custom_call.1} parent=1 // pred_region
      %s48 = ssub.s32 256, 256
      %49 = vsyncadd [#allocation6], %s48
      %s50 = sshll.u32 [#allocation7], 4
      %s51 = int_to_ptr.vmem [resolvable:$true] %s50
      %56 = dma.hbm_to_vmem [thread:$0]  %s2, 256, %s51, [#allocation6], 64, 64, 4
    $region13: #{tpu_custom_call.1} parent=1 // pred_fallthru
      _
    // Predicated region
    $region14: #{tpu_custom_call.1} parent=1 // pred_check
      _
    $region15: #{tpu_custom_call.1} parent=1 // pred_check_branch
      %58 = sbr.rel (0) target = $region17
    $region16: #{tpu_custom_call.1} parent=1 // pred_region
      %s60 = ssub.s32 256, 256
      %61 = vsyncadd [#allocation9], %s60
      %s62 = sshll.u32 [#allocation8], 4
      %s63 = int_to_ptr.vmem [resolvable:$true] %s62
      %68 = dma.hbm_to_vmem [thread:$0]  %s3, 256, %s63, [#allocation9], 64, 64, 4
    $region17: #{tpu_custom_call.1} parent=1 // pred_fallthru
      _
    // Predicated region
    $region18: #{tpu_custom_call.1} parent=1 // pred_check
      _
    $region19: #{tpu_custom_call.1} parent=1 // pred_check_branch
      %70 = sbr.rel (0) target = $region21
    $region20: #{tpu_custom_call.1} parent=1 // pred_region
      %s72 = ssub.s32 16, 16
      %73 = vsyncadd [#allocation9], %s72
      %s75 = sshll.u32 [#allocation10], 4
      %s76 = int_to_ptr.vmem [resolvable:$true] %s75
      %78 = dma.hbm_to_vmem [thread:$0]  %s4, 16, %s76, [#allocation9]
    $region21: #{tpu_custom_call.1} parent=1 // pred_fallthru
      _
    // Predicated region
    $region22: #{tpu_custom_call.1} parent=1 // pred_check
      _
    $region23: #{tpu_custom_call.1} parent=1 // pred_check_branch
      %80 = sbr.rel (0) target = $region25
    $region24: #{tpu_custom_call.1} parent=1 // pred_region
      %s82 = ssub.s32 16, 16
      %83 = vsyncadd [#allocation12], %s82
      %s85 = sshll.u32 [#allocation11], 4
      %s86 = int_to_ptr.vmem [resolvable:$true] %s85
      %88 = dma.hbm_to_vmem [thread:$0]  %s5, 16, %s86, [#allocation12]
    $region25: #{tpu_custom_call.1} parent=1 // pred_fallthru
      _
    // Predicated region
    $region26: #{tpu_custom_call.1} parent=1 // pred_check
      _
    $region27: #{tpu_custom_call.1} parent=1 // pred_check_branch
      %90 = sbr.rel (0) target = $region29
    $region28: #{tpu_custom_call.1} parent=1 // pred_region
      %s92 = ssub.s32 16, 16
      %93 = vsyncadd [#allocation12], %s92
      %s95 = sshll.u32 [#allocation13], 4
      %s96 = int_to_ptr.vmem [resolvable:$true] %s95
      %98 = dma.hbm_to_vmem [thread:$0]  %s6, 16, %s96, [#allocation12]
    $region29: #{tpu_custom_call.1} parent=1 // pred_fallthru
      _
    // Predicated region
    $region30: #{tpu_custom_call.1} parent=1 // pred_check
      _
    $region31: #{tpu_custom_call.1} parent=1 // pred_check_branch
      %100 = sbr.rel (0) target = $region33
    $region32: #{tpu_custom_call.1} parent=1 // pred_region
      %101 = dma.done [#allocation3], 128
    $region33: #{tpu_custom_call.1} parent=1 // pred_fallthru
      _
    // Predicated region
    $region34: #{tpu_custom_call.1} parent=1 // pred_check
      _
    $region35: #{tpu_custom_call.1} parent=1 // pred_check_branch
      %103 = sbr.rel (0) target = $region37
    $region36: #{tpu_custom_call.1} parent=1 // pred_region
      %104 = dma.done [#allocation6], 256
    $region37: #{tpu_custom_call.1} parent=1 // pred_fallthru
      _
    // Predicated region
    $region38: #{tpu_custom_call.1} parent=1 // pred_check
      _
    $region39: #{tpu_custom_call.1} parent=1 // pred_check_branch
      %106 = sbr.rel (0) target = $region41
    $region40: #{tpu_custom_call.1} parent=1 // pred_region
      %107 = dma.done [#allocation6], 256
    $region41: #{tpu_custom_call.1} parent=1 // pred_fallthru
      _
    // Predicated region
    $region42: #{tpu_custom_call.1} parent=1 // pred_check
      _
    $region43: #{tpu_custom_call.1} parent=1 // pred_check_branch
      %109 = sbr.rel (0) target = $region45
    $region44: #{tpu_custom_call.1} parent=1 // pred_region
      %110 = dma.done [#allocation9], 256
    $region45: #{tpu_custom_call.1} parent=1 // pred_fallthru
      _
    // Predicated region
    $region46: #{tpu_custom_call.1} parent=1 // pred_check
      _
    $region47: #{tpu_custom_call.1} parent=1 // pred_check_branch
      %112 = sbr.rel (0) target = $region49
    $region48: #{tpu_custom_call.1} parent=1 // pred_region
      %113 = dma.done [#allocation9], 16
    $region49: #{tpu_custom_call.1} parent=1 // pred_fallthru
      _
    // Predicated region
    $region50: #{tpu_custom_call.1} parent=1 // pred_check
      _
    $region51: #{tpu_custom_call.1} parent=1 // pred_check_branch
      %115 = sbr.rel (0) target = $region53
    $region52: #{tpu_custom_call.1} parent=1 // pred_region
      %116 = dma.done [#allocation12], 16
    $region53: #{tpu_custom_call.1} parent=1 // pred_fallthru
      _
    // Predicated region
    $region54: #{tpu_custom_call.1} parent=1 // pred_check
      _
    $region55: #{tpu_custom_call.1} parent=1 // pred_check_branch
      %118 = sbr.rel (0) target = $region57
    $region56: #{tpu_custom_call.1} parent=1 // pred_region
      %119 = dma.done [#allocation12], 16
    $region57: #{tpu_custom_call.1} parent=1 // pred_fallthru
      _
    %v121 = vld [vmem:[#allocation2] sm:$0xf]
    %v122 = vld [vmem:[#allocation2 + $0x4] sm:$0xf]
    %v123 = vld [vmem:[#allocation5] sm:$0xf]
    %v124 = vld [vmem:[#allocation5 + $0x4] sm:$0xf]
    %v125 = vld [vmem:[#allocation5 + $0x8] sm:$0xf]
    %v126 = vld [vmem:[#allocation5 + $0xc] sm:$0xf]
    %v127 = vld [vmem:[#allocation10] sm:$0x1]
    %v129 = vlaneseq
    %v130 = vshrl.u32 %v129, 7
    %v131 = vsub.s32 0, %v130
    %v132 = vrot.slane %v127, %v131
    %v136 = vunpack.c.l.b16 %v121
    %v137 = vunpack.c.l.b16 %v122
    %v138 = vpack.c.b16 %v137, %v136
    %v143 = vunpack.c.l.b16 %v123
    %v144 = vunpack.c.l.b16 %v124
    %v145 = vunpack.c.l.b16 %v125
    %v146 = vunpack.c.l.b16 %v126
    %v147 = vpack.c.b16 %v144, %v143
    %v148 = vpack.c.b16 %v146, %v145
    %vm151 = vcmask 261120
    %v153 = vsel %vm151, %v138, 0
    %155 = vmatprep.subr.bf16.mxu0 0
    %156 = vmatpush1.bf16.msra.mxu0 %v147
    %157 = vmatprep.subr.bf16.mxu0 0
    %158 = vmatpush1.bf16.msra.mxu0 %v148
    %159 = vmatprep.subr.bf16.mxu0 0
    %160 = vmatpush1.bf16.msra.mxu0 0
    %161 = vmatprep.subr.bf16.mxu0 0
    %162 = vmatpush1.bf16.msra.mxu0 0
    %163 = vmatprep.subr.bf16.mxu0 0
    %164 = vmatpush1.bf16.msra.mxu0 0
    %165 = vmatprep.subr.bf16.mxu0 0
    %166 = vmatpush1.bf16.msra.mxu0 0
    %167 = vmatprep.subr.bf16.mxu0 0
    %168 = vmatpush1.bf16.msra.mxu0 0
    %169 = vmatprep.subr.bf16.mxu0 0
    %170 = vmatpush1.bf16.msra.mxu0 0
    %171 = vmatprep.subr.bf16.mxu0 0
    %172 = vmatpush1.bf16.msra.mxu0 0
    %173 = vmatprep.subr.bf16.mxu0 0
    %174 = vmatpush1.bf16.msra.mxu0 0
    %175 = vmatprep.subr.bf16.mxu0 0
    %176 = vmatpush1.bf16.msra.mxu0 0
    %177 = vmatprep.subr.bf16.mxu0 0
    %178 = vmatpush1.bf16.msra.mxu0 0
    %179 = vmatprep.subr.bf16.mxu0 0
    %180 = vmatpush1.bf16.msra.mxu0 0
    %181 = vmatprep.subr.bf16.mxu0 0
    %182 = vmatpush1.bf16.msra.mxu0 0
    %183 = vmatprep.subr.bf16.mxu0 0
    %184 = vmatpush1.bf16.msra.mxu0 0
    %185 = vmatprep.subr.bf16.mxu0 0
    %186 = vmatpush1.bf16.msra.mxu0 0
    %187 = vmatprep.mubr.bf16.mxu0 0
    %188 = vmatmul.mubr.bf16.gmra.mrb[0].mxu0 %v153
    %v189 = vpop.f32.mrb[0].mxu0
    %v190 = vadd.f32 %v132, %v189
    %v191 = vpop.f32.mrb[0].mxu0
    %v192 = vpop.f32.mrb[0].mxu0
    %v193 = vadd.f32 %v132, %v192
    %v194 = vpop.f32.mrb[0].mxu0
    %195 = vdwg.mxu0
    %v196 = vmul.f32 %v190, 0.35355338
    %v197 = vmul.f32 %v193, 0.35355338
    %v198 = vpack.c.bf16 %v197, %v196
    %v200 = vunpack.c.l.b16 %v198
    %v201 = vunpack.c.h.b16 %v198
    %v202 = vpack.c.b16 %v200, %v200
    %v203 = vpack.c.b16 %v201, %v201
    %vm206 = vcmask 257024
    %207 = vst.msk [vmem:[#allocation14] sm:$0xf] %vm206, %v202
    %208 = vst.msk [vmem:[#allocation14 + $0x4] sm:$0xf] %vm206, %v203
    %v209 = vld [vmem:[#allocation7] sm:$0xf]
    %v210 = vld [vmem:[#allocation7 + $0x4] sm:$0xf]
    %v211 = vld [vmem:[#allocation7 + $0x8] sm:$0xf]
    %v212 = vld [vmem:[#allocation7 + $0xc] sm:$0xf]
    %v213 = vld [vmem:[#allocation11] sm:$0x1]
    %v215 = vlaneseq
    %v216 = vshrl.u32 %v215, 7
    %v217 = vsub.s32 0, %v216
    %v218 = vrot.slane %v213, %v217
    %v224 = vunpack.c.l.b16 %v209
    %v225 = vunpack.c.l.b16 %v210
    %v226 = vunpack.c.l.b16 %v211
    %v227 = vunpack.c.l.b16 %v212
    %v228 = vpack.c.b16 %v225, %v224
    %v229 = vpack.c.b16 %v227, %v226
    %232 = vmatprep.subr.bf16.mxu0 0
    %233 = vmatpush1.bf16.msra.mxu0 %v228
    %234 = vmatprep.subr.bf16.mxu0 0
    %235 = vmatpush1.bf16.msra.mxu0 %v229
    %236 = vmatprep.subr.bf16.mxu0 0
    %237 = vmatpush1.bf16.msra.mxu0 0
    %238 = vmatprep.subr.bf16.mxu0 0
    %239 = vmatpush1.bf16.msra.mxu0 0
    %240 = vmatprep.subr.bf16.mxu0 0
    %241 = vmatpush1.bf16.msra.mxu0 0
    %242 = vmatprep.subr.bf16.mxu0 0
    %243 = vmatpush1.bf16.msra.mxu0 0
    %244 = vmatprep.subr.bf16.mxu0 0
    %245 = vmatpush1.bf16.msra.mxu0 0
    %246 = vmatprep.subr.bf16.mxu0 0
    %247 = vmatpush1.bf16.msra.mxu0 0
    %248 = vmatprep.subr.bf16.mxu0 0
    %249 = vmatpush1.bf16.msra.mxu0 0
    %250 = vmatprep.subr.bf16.mxu0 0
    %251 = vmatpush1.bf16.msra.mxu0 0
    %252 = vmatprep.subr.bf16.mxu0 0
    %253 = vmatpush1.bf16.msra.mxu0 0
    %254 = vmatprep.subr.bf16.mxu0 0
    %255 = vmatpush1.bf16.msra.mxu0 0
    %256 = vmatprep.subr.bf16.mxu0 0
    %257 = vmatpush1.bf16.msra.mxu0 0
    %258 = vmatprep.subr.bf16.mxu0 0
    %259 = vmatpush1.bf16.msra.mxu0 0
    %260 = vmatprep.subr.bf16.mxu0 0
    %261 = vmatpush1.bf16.msra.mxu0 0
    %262 = vmatprep.subr.bf16.mxu0 0
    %263 = vmatpush1.bf16.msra.mxu0 0
    %264 = vmatprep.mubr.bf16.mxu0 0
    %265 = vmatmul.mubr.bf16.gmra.mrb[0].mxu0 %v153
    %v266 = vpop.f32.mrb[0].mxu0
    %v267 = vadd.f32 %v218, %v266
    %v268 = vpop.f32.mrb[0].mxu0
    %v269 = vpop.f32.mrb[0].mxu0
    %v270 = vadd.f32 %v218, %v269
    %v271 = vpop.f32.mrb[0].mxu0
    %272 = vdwg.mxu0
    %v273 = vpack.c.bf16 %v270, %v267
    %v275 = vunpack.c.l.b16 %v273
    %v276 = vunpack.c.h.b16 %v273
    %v277 = vpack.c.b16 %v275, %v275
    %v278 = vpack.c.b16 %v276, %v276
    %281 = vst.msk [vmem:[#allocation15] sm:$0xf] %vm206, %v277
    %282 = vst.msk [vmem:[#allocation15 + $0x4] sm:$0xf] %vm206, %v278
    %v283 = vld [vmem:[#allocation8] sm:$0xf]
    %v284 = vld [vmem:[#allocation8 + $0x4] sm:$0xf]
    %v285 = vld [vmem:[#allocation8 + $0x8] sm:$0xf]
    %v286 = vld [vmem:[#allocation8 + $0xc] sm:$0xf]
    %v287 = vld [vmem:[#allocation13] sm:$0x1]
    %v289 = vlaneseq
    %v290 = vshrl.u32 %v289, 7
    %v291 = vsub.s32 0, %v290
    %v292 = vrot.slane %v287, %v291
    %v298 = vunpack.c.l.b16 %v283
    %v299 = vunpack.c.l.b16 %v284
    %v300 = vunpack.c.l.b16 %v285
    %v301 = vunpack.c.l.b16 %v286
    %v302 = vpack.c.b16 %v299, %v298
    %v303 = vpack.c.b16 %v301, %v300
    %306 = vmatprep.subr.bf16.mxu0 0
    %307 = vmatpush1.bf16.msra.mxu0 %v302
    %308 = vmatprep.subr.bf16.mxu0 0
    %309 = vmatpush1.bf16.msra.mxu0 %v303
    %310 = vmatprep.subr.bf16.mxu0 0
    %311 = vmatpush1.bf16.msra.mxu0 0
    %312 = vmatprep.subr.bf16.mxu0 0
    %313 = vmatpush1.bf16.msra.mxu0 0
    %314 = vmatprep.subr.bf16.mxu0 0
    %315 = vmatpush1.bf16.msra.mxu0 0
    %316 = vmatprep.subr.bf16.mxu0 0
    %317 = vmatpush1.bf16.msra.mxu0 0
    %318 = vmatprep.subr.bf16.mxu0 0
    %319 = vmatpush1.bf16.msra.mxu0 0
    %320 = vmatprep.subr.bf16.mxu0 0
    %321 = vmatpush1.bf16.msra.mxu0 0
    %322 = vmatprep.subr.bf16.mxu0 0
    %323 = vmatpush1.bf16.msra.mxu0 0
    %324 = vmatprep.subr.bf16.mxu0 0
    %325 = vmatpush1.bf16.msra.mxu0 0
    %326 = vmatprep.subr.bf16.mxu0 0
    %327 = vmatpush1.bf16.msra.mxu0 0
    %328 = vmatprep.subr.bf16.mxu0 0
    %329 = vmatpush1.bf16.msra.mxu0 0
    %330 = vmatprep.subr.bf16.mxu0 0
    %331 = vmatpush1.bf16.msra.mxu0 0
    %332 = vmatprep.subr.bf16.mxu0 0
    %333 = vmatpush1.bf16.msra.mxu0 0
    %334 = vmatprep.subr.bf16.mxu0 0
    %335 = vmatpush1.bf16.msra.mxu0 0
    %336 = vmatprep.subr.bf16.mxu0 0
    %337 = vmatpush1.bf16.msra.mxu0 0
    %338 = vmatprep.mubr.bf16.mxu0 0
    %339 = vmatmul.mubr.bf16.gmra.mrb[0].mxu0 %v153
    %v340 = vpop.f32.mrb[0].mxu0
    %v341 = vadd.f32 %v292, %v340
    %v342 = vpop.f32.mrb[0].mxu0
    %v343 = vpop.f32.mrb[0].mxu0
    %v344 = vadd.f32 %v292, %v343
    %v345 = vpop.f32.mrb[0].mxu0
    %346 = vdwg.mxu0
    %v347 = vpack.c.bf16 %v344, %v341
    %v349 = vunpack.c.l.b16 %v347
    %v350 = vunpack.c.h.b16 %v347
    %v351 = vpack.c.b16 %v349, %v349
    %v352 = vpack.c.b16 %v350, %v350
    %355 = vst.msk [vmem:[#allocation17] sm:$0xf] %vm206, %v351
    %356 = vst.msk [vmem:[#allocation17 + $0x4] sm:$0xf] %vm206, %v352
    // Predicated region
    $region58: #{tpu_custom_call.1} parent=1 // pred_check
      _
    $region59: #{tpu_custom_call.1} parent=1 // pred_check_branch
      %358 = sbr.rel (0) target = $region61
    $region60: #{tpu_custom_call.1} parent=1 // pred_region
      %s360 = ssub.s32 128, 128
      %361 = vsyncadd [#allocation4], %s360
      %s362 = sshll.u32 [#allocation14], 4
      %s363 = int_to_ptr.vmem [resolvable:$true] %s362
      %368 = dma.vmem_to_hbm [thread:$0]  %s363, 128, %s7, [#allocation4], 64, 64, 4
    $region61: #{tpu_custom_call.1} parent=1 // pred_fallthru
      _
    // Predicated region
    $region62: #{tpu_custom_call.1} parent=1 // pred_check
      _
    $region63: #{tpu_custom_call.1} parent=1 // pred_check_branch
      %370 = sbr.rel (0) target = $region65
    $region64: #{tpu_custom_call.1} parent=1 // pred_region
      %s372 = ssub.s32 128, 128
      %373 = vsyncadd [#allocation16], %s372
      %s374 = sshll.u32 [#allocation15], 4
      %s375 = int_to_ptr.vmem [resolvable:$true] %s374
      %380 = dma.vmem_to_hbm [thread:$0]  %s375, 128, %s8, [#allocation16], 64, 64, 4
    $region65: #{tpu_custom_call.1} parent=1 // pred_fallthru
      _
    // Predicated region
    $region66: #{tpu_custom_call.1} parent=1 // pred_check
      _
    $region67: #{tpu_custom_call.1} parent=1 // pred_check_branch
      %382 = sbr.rel (0) target = $region69
    $region68: #{tpu_custom_call.1} parent=1 // pred_region
      %s384 = ssub.s32 128, 128
      %385 = vsyncadd [#allocation16], %s384
      %s386 = sshll.u32 [#allocation17], 4
      %s387 = int_to_ptr.vmem [resolvable:$true] %s386
      %392 = dma.vmem_to_hbm [thread:$0]  %s387, 128, %s9, [#allocation16], 64, 64, 4
    $region69: #{tpu_custom_call.1} parent=1 // pred_fallthru
      _
    // Predicated region
    $region70: #{tpu_custom_call.1} parent=1 // pred_check
      _
    $region71: #{tpu_custom_call.1} parent=1 // pred_check_branch
      %394 = sbr.rel (0) target = $region73
    $region72: #{tpu_custom_call.1} parent=1 // pred_region
      %395 = dma.done [#allocation4], 128
    $region73: #{tpu_custom_call.1} parent=1 // pred_fallthru
      _
    // Predicated region
    $region74: #{tpu_custom_call.1} parent=1 // pred_check
      _
    $region75: #{tpu_custom_call.1} parent=1 // pred_check_branch
      %397 = sbr.rel (0) target = $region77
    $region76: #{tpu_custom_call.1} parent=1 // pred_region
      %398 = dma.done [#allocation16], 128
    $region77: #{tpu_custom_call.1} parent=1 // pred_fallthru
      _
    // Predicated region
    $region78: #{tpu_custom_call.1} parent=1 // pred_check
      _
    $region79: #{tpu_custom_call.1} parent=1 // pred_check_branch
      %400 = sbr.rel (0) target = $region81
    $region80: #{tpu_custom_call.1} parent=1 // pred_region
      %401 = dma.done [#allocation16], 128
    $region81: #{tpu_custom_call.1} parent=1 // pred_fallthru
      _
    %402 = vsyncpa [#allocation3], 1
    %403 = vsyncpa [#allocation6], 1
    %404 = vsyncpa [#allocation9], 1
    %405 = vsyncpa [#allocation12], 1
    %406 = vsyncpa [#allocation4], 1
    %407 = vsyncpa [#allocation16], 1

// kernel: tpu_custom_call.1
$region0: #{tpu_custom_call.1}
  #allocation0 [shape = 'u32[]', space=smem, size = 0x4, offset = 0x4, fixed_abs, tag = 'smem constant byte address 0x4 - core index']
  #allocation1 [shape = 'u32[144,128]{1,0:T(1,128)}', space=vmem, size = 0x12000, scoped, tag = 'internal scratch']
  %s0 = inlined_call_operand.hbm [shape: bf16[16,32], index: 0, kind: input, shape index: {}]
  %s1 = inlined_call_operand.hbm [shape: bf16[32,32], index: 1, kind: input, shape index: {}]
  %s2 = inlined_call_operand.hbm [shape: bf16[32,32], index: 2, kind: input, shape index: {}]
  %s3 = inlined_call_operand.hbm [shape: bf16[32,32], index: 3, kind: input, shape index: {}]
  %s4 = inlined_call_operand.hbm [shape: f32[1,32], index: 4, kind: input, shape index: {}]
  %s5 = inlined_call_operand.hbm [shape: f32[1,32], index: 5, kind: input, shape index: {}]
  %s6 = inlined_call_operand.hbm [shape: f32[1,32], index: 6, kind: input, shape index: {}]
  %s7 = inlined_call_operand.hbm [shape: bf16[16,32], index: 7, kind: output, shape index: {0}]
  %s8 = inlined_call_operand.hbm [shape: bf16[16,32], index: 8, kind: output, shape index: {1}]
  %s9 = inlined_call_operand.hbm [shape: bf16[16,32], index: 9, kind: output, shape index: {2}]
  %10 = xla_tuple %s7, %s8, %s9
  %s11 = sld [smem:[#allocation0]]
  $region82: #{tpu_custom_call.1} parent=0
    _
  %s13 = ssub.s32 1, %s11
  %s14 = scalar_select 0, %s13, %s11
  $region1: #{tpu_custom_call.1} parent=0
    #allocation2 [shape = 'u8[4096]{0}', space=vmem, size = 0x1000, scoped, tag = 'input window, operand 0, single buffered']
    #allocation3 [shape = 's32[1]{0}', space=sflag, size = 0x4, scoped, tag = 'scoped memory for tpu_custom_call.1']
    #allocation4 [shape = 's32[1]{0}', space=sflag, size = 0x4, scoped, tag = 'scoped memory for tpu_custom_call.1']
    #allocation5 [shape = 'u8[8192]{0}', space=vmem, size = 0x2000, scoped, tag = 'input window, operand 1, single buffered']
    #allocation6 [shape = 's32[1]{0}', space=sflag, size = 0x4, scoped, tag = 'scoped memory for tpu_custom_call.1']
    #allocation7 [shape = 'u8[8192]{0}', space=vmem, size = 0x2000, scoped, tag = 'input window, operand 2, single buffered']
    #allocation8 [shape = 'u8[8192]{0}', space=vmem, size = 0x2000, scoped, tag = 'input window, operand 3, single buffered']
    #allocation9 [shape = 's32[1]{0}', space=sflag, size = 0x4, scoped, tag = 'scoped memory for tpu_custom_call.1']
    #allocation10 [shape = 'u8[512]{0}', space=vmem, size = 0x400, scoped, tag = 'input window, operand 4, single buffered']
    #allocation11 [shape = 'u8[512]{0}', space=vmem, size = 0x400, scoped, tag = 'input window, operand 5, single buffered']
    #allocation12 [shape = 's32[1]{0}', space=sflag, size = 0x4, scoped, tag = 'scoped memory for tpu_custom_call.1']
    #allocation13 [shape = 'u8[512]{0}', space=vmem, size = 0x400, scoped, tag = 'input window, operand 6, single buffered']
    #allocation14 [shape = 'u8[4096]{0}', space=vmem, size = 0x1000, scoped, tag = 'output window, operand 0, single buffered']
    #allocation15 [shape = 'u8[4096]{0}', space=vmem, size = 0x1000, scoped, tag = 'output window, operand 1, single buffered']
    #allocation16 [shape = 's32[1]{0}', space=sflag, size = 0x4, scoped, tag = 'scoped memory for tpu_custom_call.1']
    #allocation17 [shape = 'u8[4096]{0}', space=vmem, size = 0x1000, scoped, tag = 'output window, operand 2, single buffered']
    %15 = vsyncpa [#allocation3], 0
    %16 = vsyncpa [#allocation6], 0
    %17 = vsyncpa [#allocation9], 0
    %18 = vsyncpa [#allocation12], 0
    %19 = vsyncpa [#allocation4], 0
    %20 = vsyncpa [#allocation16], 0
    // Predicated region
    $region2: #{tpu_custom_call.1} parent=1 // pred_check
      _
    $region3: #{tpu_custom_call.1} parent=1 // pred_check_branch
      %22 = sbr.rel (0) target = $region5
    $region4: #{tpu_custom_call.1} parent=1 // pred_region
      %s24 = ssub.s32 128, 128
      %25 = vsyncadd [#allocation3], %s24
      %s26 = sshll.u32 [#allocation2], 4
      %s27 = int_to_ptr.vmem [resolvable:$true] %s26
      %32 = dma.hbm_to_vmem [thread:$0]  %s0, 128, %s27, [#allocation3], 64, 64, 4
    $region5: #{tpu_custom_call.1} parent=1 // pred_fallthru
      _
    // Predicated region
    $region6: #{tpu_custom_call.1} parent=1 // pred_check
      _
    $region7: #{tpu_custom_call.1} parent=1 // pred_check_branch
      %34 = sbr.rel (0) target = $region9
    $region8: #{tpu_custom_call.1} parent=1 // pred_region
      %s36 = ssub.s32 256, 256
      %37 = vsyncadd [#allocation6], %s36
      %s38 = sshll.u32 [#allocation5], 4
      %s39 = int_to_ptr.vmem [resolvable:$true] %s38
      %44 = dma.hbm_to_vmem [thread:$0]  %s1, 256, %s39, [#allocation6], 64, 64, 4
    $region9: #{tpu_custom_call.1} parent=1 // pred_fallthru
      _
    // Predicated region
    $region10: #{tpu_custom_call.1} parent=1 // pred_check
      _
    $region11: #{tpu_custom_call.1} parent=1 // pred_check_branch
      %46 = sbr.rel (0) target = $region13
    $region12: #{tpu_custom_call.1} parent=1 // pred_region
      %s48 = ssub.s32 256, 256
      %49 = vsyncadd [#allocation6], %s48
      %s50 = sshll.u32 [#allocation7], 4
      %s51 = int_to_ptr.vmem [resolvable:$true] %s50
      %56 = dma.hbm_to_vmem [thread:$0]  %s2, 256, %s51, [#allocation6], 64, 64, 4
    $region13: #{tpu_custom_call.1} parent=1 // pred_fallthru
      _
    // Predicated region
    $region14: #{tpu_custom_call.1} parent=1 // pred_check
      _
    $region15: #{tpu_custom_call.1} parent=1 // pred_check_branch
      %58 = sbr.rel (0) target = $region17
    $region16: #{tpu_custom_call.1} parent=1 // pred_region
      %s60 = ssub.s32 256, 256
      %61 = vsyncadd [#allocation9], %s60
      %s62 = sshll.u32 [#allocation8], 4
      %s63 = int_to_ptr.vmem [resolvable:$true] %s62
      %68 = dma.hbm_to_vmem [thread:$0]  %s3, 256, %s63, [#allocation9], 64, 64, 4
    $region17: #{tpu_custom_call.1} parent=1 // pred_fallthru
      _
    // Predicated region
    $region18: #{tpu_custom_call.1} parent=1 // pred_check
      _
    $region19: #{tpu_custom_call.1} parent=1 // pred_check_branch
      %70 = sbr.rel (0) target = $region21
    $region20: #{tpu_custom_call.1} parent=1 // pred_region
      %s72 = ssub.s32 16, 16
      %73 = vsyncadd [#allocation9], %s72
      %s75 = sshll.u32 [#allocation10], 4
      %s76 = int_to_ptr.vmem [resolvable:$true] %s75
      %78 = dma.hbm_to_vmem [thread:$0]  %s4, 16, %s76, [#allocation9]
    $region21: #{tpu_custom_call.1} parent=1 // pred_fallthru
      _
    // Predicated region
    $region22: #{tpu_custom_call.1} parent=1 // pred_check
      _
    $region23: #{tpu_custom_call.1} parent=1 // pred_check_branch
      %80 = sbr.rel (0) target = $region25
    $region24: #{tpu_custom_call.1} parent=1 // pred_region
      %s82 = ssub.s32 16, 16
      %83 = vsyncadd [#allocation12], %s82
      %s85 = sshll.u32 [#allocation11], 4
      %s86 = int_to_ptr.vmem [resolvable:$true] %s85
      %88 = dma.hbm_to_vmem [thread:$0]  %s5, 16, %s86, [#allocation12]
    $region25: #{tpu_custom_call.1} parent=1 // pred_fallthru
      _
    // Predicated region
    $region26: #{tpu_custom_call.1} parent=1 // pred_check
      _
    $region27: #{tpu_custom_call.1} parent=1 // pred_check_branch
      %90 = sbr.rel (0) target = $region29
    $region28: #{tpu_custom_call.1} parent=1 // pred_region
      %s92 = ssub.s32 16, 16
      %93 = vsyncadd [#allocation12], %s92
      %s95 = sshll.u32 [#allocation13], 4
      %s96 = int_to_ptr.vmem [resolvable:$true] %s95
      %98 = dma.hbm_to_vmem [thread:$0]  %s6, 16, %s96, [#allocation12]
    $region29: #{tpu_custom_call.1} parent=1 // pred_fallthru
      _
    // Predicated region
    $region30: #{tpu_custom_call.1} parent=1 // pred_check
      _
    $region31: #{tpu_custom_call.1} parent=1 // pred_check_branch
      %100 = sbr.rel (0) target = $region33
    $region32: #{tpu_custom_call.1} parent=1 // pred_region
      %101 = dma.done [#allocation3], 128
    $region33: #{tpu_custom_call.1} parent=1 // pred_fallthru
      _
    // Predicated region
    $region34: #{tpu_custom_call.1} parent=1 // pred_check
      _
    $region35: #{tpu_custom_call.1} parent=1 // pred_check_branch
      %103 = sbr.rel (0) target = $region37
    $region36: #{tpu_custom_call.1} parent=1 // pred_region
      %104 = dma.done [#allocation6], 256
    $region37: #{tpu_custom_call.1} parent=1 // pred_fallthru
      _
    // Predicated region
    $region38: #{tpu_custom_call.1} parent=1 // pred_check
      _
    $region39: #{tpu_custom_call.1} parent=1 // pred_check_branch
      %106 = sbr.rel (0) target = $region41
    $region40: #{tpu_custom_call.1} parent=1 // pred_region
      %107 = dma.done [#allocation6], 256
    $region41: #{tpu_custom_call.1} parent=1 // pred_fallthru
      _
    // Predicated region
    $region42: #{tpu_custom_call.1} parent=1 // pred_check
      _
    $region43: #{tpu_custom_call.1} parent=1 // pred_check_branch
      %109 = sbr.rel (0) target = $region45
    $region44: #{tpu_custom_call.1} parent=1 // pred_region
      %110 = dma.done [#allocation9], 256
    $region45: #{tpu_custom_call.1} parent=1 // pred_fallthru
      _
    // Predicated region
    $region46: #{tpu_custom_call.1} parent=1 // pred_check
      _
    $region47: #{tpu_custom_call.1} parent=1 // pred_check_branch
      %112 = sbr.rel (0) target = $region49
    $region48: #{tpu_custom_call.1} parent=1 // pred_region
      %113 = dma.done [#allocation9], 16
    $region49: #{tpu_custom_call.1} parent=1 // pred_fallthru
      _
    // Predicated region
    $region50: #{tpu_custom_call.1} parent=1 // pred_check
      _
    $region51: #{tpu_custom_call.1} parent=1 // pred_check_branch
      %115 = sbr.rel (0) target = $region53
    $region52: #{tpu_custom_call.1} parent=1 // pred_region
      %116 = dma.done [#allocation12], 16
    $region53: #{tpu_custom_call.1} parent=1 // pred_fallthru
      _
    // Predicated region
    $region54: #{tpu_custom_call.1} parent=1 // pred_check
      _
    $region55: #{tpu_custom_call.1} parent=1 // pred_check_branch
      %118 = sbr.rel (0) target = $region57
    $region56: #{tpu_custom_call.1} parent=1 // pred_region
      %119 = dma.done [#allocation12], 16
    $region57: #{tpu_custom_call.1} parent=1 // pred_fallthru
      _
    %v121 = vld [vmem:[#allocation2] sm:$0xf]
    %v122 = vld [vmem:[#allocation2 + $0x4] sm:$0xf]
    %v123 = vld [vmem:[#allocation5] sm:$0xf]
    %v124 = vld [vmem:[#allocation5 + $0x4] sm:$0xf]
    %v125 = vld [vmem:[#allocation5 + $0x8] sm:$0xf]
    %v126 = vld [vmem:[#allocation5 + $0xc] sm:$0xf]
    %v127 = vld [vmem:[#allocation10] sm:$0x1]
    %v129 = vlaneseq
    %v130 = vshrl.u32 %v129, 7
    %v131 = vsub.s32 0, %v130
    %v132 = vrot.slane %v127, %v131
    %v136 = vunpack.c.l.b16 %v121
    %v137 = vunpack.c.l.b16 %v122
    %v138 = vpack.c.b16 %v137, %v136
    %v143 = vunpack.c.l.b16 %v123
    %v144 = vunpack.c.l.b16 %v124
    %v145 = vunpack.c.l.b16 %v125
    %v146 = vunpack.c.l.b16 %v126
    %v147 = vpack.c.b16 %v144, %v143
    %v148 = vpack.c.b16 %v146, %v145
    %vm151 = vcmask 261120
    %v153 = vsel %vm151, %v138, 0
    %155 = vmatprep.subr.bf16.mxu0 0
    %156 = vmatpush1.bf16.msra.mxu0 %v147
    %157 = vmatprep.subr.bf16.mxu0 0
    %158 = vmatpush1.bf16.msra.mxu0 %v148
    %159 = vmatprep.subr.bf16.mxu0 0
    %160 = vmatpush1.bf16.msra.mxu0 0
    %161 = vmatprep.subr.bf16.mxu0 0
    %162 = vmatpush1.bf16.msra.mxu0 0
    %163 = vmatprep.subr.bf16.mxu0 0
    %164 = vmatpush1.bf16.msra.mxu0 0
    %165 = vmatprep.subr.bf16.mxu0 0
    %166 = vmatpush1.bf16.msra.mxu0 0
    %167 = vmatprep.subr.bf16.mxu0 0
    %168 = vmatpush1.bf16.msra.mxu0 0
    %169 = vmatprep.subr.bf16.mxu0 0
    %170 = vmatpush1.bf16.msra.mxu0 0
    %171 = vmatprep.subr.bf16.mxu0 0
    %172 = vmatpush1.bf16.msra.mxu0 0
    %173 = vmatprep.subr.bf16.mxu0 0
    %174 = vmatpush1.bf16.msra.mxu0 0
    %175 = vmatprep.subr.bf16.mxu0 0
    %176 = vmatpush1.bf16.msra.mxu0 0
    %177 = vmatprep.subr.bf16.mxu0 0
    %178 = vmatpush1.bf16.msra.mxu0 0
    %179 = vmatprep.subr.bf16.mxu0 0
    %180 = vmatpush1.bf16.msra.mxu0 0
    %181 = vmatprep.subr.bf16.mxu0 0
    %182 = vmatpush1.bf16.msra.mxu0 0
    %183 = vmatprep.subr.bf16.mxu0 0
    %184 = vmatpush1.bf16.msra.mxu0 0
    %185 = vmatprep.subr.bf16.mxu0 0
    %186 = vmatpush1.bf16.msra.mxu0 0
    %187 = vmatprep.mubr.bf16.mxu0 0
    %188 = vmatmul.mubr.bf16.gmra.mrb[0].mxu0 %v153
    %v189 = vpop.f32.mrb[0].mxu0
    %v190 = vadd.f32 %v132, %v189
    %v191 = vpop.f32.mrb[0].mxu0
    %v192 = vpop.f32.mrb[0].mxu0
    %v193 = vadd.f32 %v132, %v192
    %v194 = vpop.f32.mrb[0].mxu0
    %195 = vdwg.mxu0
    %v196 = vmul.f32 %v190, 0.35355338
    %v197 = vmul.f32 %v193, 0.35355338
    %v198 = vpack.c.bf16 %v197, %v196
    %v200 = vunpack.c.l.b16 %v198
    %v201 = vunpack.c.h.b16 %v198
    %v202 = vpack.c.b16 %v200, %v200
    %v203 = vpack.c.b16 %v201, %v201
    %vm206 = vcmask 257024
    %207 = vst.msk [vmem:[#allocation14] sm:$0xf] %vm206, %v202
    %208 = vst.msk [vmem:[#allocation14 + $0x4] sm:$0xf] %vm206, %v203
    %v209 = vld [vmem:[#allocation7] sm:$0xf]
    %v210 = vld [vmem:[#allocation7 + $0x4] sm:$0xf]
    %v211 = vld [vmem:[#allocation7 + $0x8] sm:$0xf]
    %v212 = vld [vmem:[#allocation7 + $0xc] sm:$0xf]
    %v213 = vld [vmem:[#allocation11] sm:$0x1]
    %v215 = vlaneseq
    %v216 = vshrl.u32 %v215, 7
    %v217 = vsub.s32 0, %v216
    %v218 = vrot.slane %v213, %v217
    %v224 = vunpack.c.l.b16 %v209
    %v225 = vunpack.c.l.b16 %v210
    %v226 = vunpack.c.l.b16 %v211
    %v227 = vunpack.c.l.b16 %v212
    %v228 = vpack.c.b16 %v225, %v224
    %v229 = vpack.c.b16 %v227, %v226
    %232 = vmatprep.subr.bf16.mxu0 0
    %233 = vmatpush1.bf16.msra.mxu0 %v228
    %234 = vmatprep.subr.bf16.mxu0 0
    %235 = vmatpush1.bf16.msra.mxu0 %v229
    %236 = vmatprep.subr.bf16.mxu0 0
    %237 = vmatpush1.bf16.msra.mxu0 0
    %238 = vmatprep.subr.bf16.mxu0 0
    %239 = vmatpush1.bf16.msra.mxu0 0
    %240 = vmatprep.subr.bf16.mxu0 0
    %241 = vmatpush1.bf16.msra.mxu0 0
    %242 = vmatprep.subr.bf16.mxu0 0
    %243 = vmatpush1.bf16.msra.mxu0 0
    %244 = vmatprep.subr.bf16.mxu0 0
    %245 = vmatpush1.bf16.msra.mxu0 0
    %246 = vmatprep.subr.bf16.mxu0 0
    %247 = vmatpush1.bf16.msra.mxu0 0
    %248 = vmatprep.subr.bf16.mxu0 0
    %249 = vmatpush1.bf16.msra.mxu0 0
    %250 = vmatprep.subr.bf16.mxu0 0
    %251 = vmatpush1.bf16.msra.mxu0 0
    %252 = vmatprep.subr.bf16.mxu0 0
    %253 = vmatpush1.bf16.msra.mxu0 0
    %254 = vmatprep.subr.bf16.mxu0 0
    %255 = vmatpush1.bf16.msra.mxu0 0
    %256 = vmatprep.subr.bf16.mxu0 0
    %257 = vmatpush1.bf16.msra.mxu0 0
    %258 = vmatprep.subr.bf16.mxu0 0
    %259 = vmatpush1.bf16.msra.mxu0 0
    %260 = vmatprep.subr.bf16.mxu0 0
    %261 = vmatpush1.bf16.msra.mxu0 0
    %262 = vmatprep.subr.bf16.mxu0 0
    %263 = vmatpush1.bf16.msra.mxu0 0
    %264 = vmatprep.mubr.bf16.mxu0 0
    %265 = vmatmul.mubr.bf16.gmra.mrb[0].mxu0 %v153
    %v266 = vpop.f32.mrb[0].mxu0
    %v267 = vadd.f32 %v218, %v266
    %v268 = vpop.f32.mrb[0].mxu0
    %v269 = vpop.f32.mrb[0].mxu0
    %v270 = vadd.f32 %v218, %v269
    %v271 = vpop.f32.mrb[0].mxu0
    %272 = vdwg.mxu0
    %v273 = vpack.c.bf16 %v270, %v267
    %v275 = vunpack.c.l.b16 %v273
    %v276 = vunpack.c.h.b16 %v273
    %v277 = vpack.c.b16 %v275, %v275
    %v278 = vpack.c.b16 %v276, %v276
    %281 = vst.msk [vmem:[#allocation15] sm:$0xf] %vm206, %v277
    %282 = vst.msk [vmem:[#allocation15 + $0x4] sm:$0xf] %vm206, %v278
    %v283 = vld [vmem:[#allocation8] sm:$0xf]
    %v284 = vld [vmem:[#allocation8 + $0x4] sm:$0xf]
    %v285 = vld [vmem:[#allocation8 + $0x8] sm:$0xf]
    %v286 = vld [vmem:[#allocation8 + $0xc] sm:$0xf]
    %v287 = vld [vmem:[#allocation13] sm:$0x1]
    %v289 = vlaneseq
    %v290 = vshrl.u32 %v289, 7
    %v291 = vsub.s32 0, %v290
    %v292 = vrot.slane %v287, %v291
    %v298 = vunpack.c.l.b16 %v283
    %v299 = vunpack.c.l.b16 %v284
    %v300 = vunpack.c.l.b16 %v285
    %v301 = vunpack.c.l.b16 %v286
    %v302 = vpack.c.b16 %v299, %v298
    %v303 = vpack.c.b16 %v301, %v300
    %306 = vmatprep.subr.bf16.mxu0 0
    %307 = vmatpush1.bf16.msra.mxu0 %v302
    %308 = vmatprep.subr.bf16.mxu0 0
    %309 = vmatpush1.bf16.msra.mxu0 %v303
    %310 = vmatprep.subr.bf16.mxu0 0
    %311 = vmatpush1.bf16.msra.mxu0 0
    %312 = vmatprep.subr.bf16.mxu0 0
    %313 = vmatpush1.bf16.msra.mxu0 0
    %314 = vmatprep.subr.bf16.mxu0 0
    %315 = vmatpush1.bf16.msra.mxu0 0
    %316 = vmatprep.subr.bf16.mxu0 0
    %317 = vmatpush1.bf16.msra.mxu0 0
    %318 = vmatprep.subr.bf16.mxu0 0
    %319 = vmatpush1.bf16.msra.mxu0 0
    %320 = vmatprep.subr.bf16.mxu0 0
    %321 = vmatpush1.bf16.msra.mxu0 0
    %322 = vmatprep.subr.bf16.mxu0 0
    %323 = vmatpush1.bf16.msra.mxu0 0
    %324 = vmatprep.subr.bf16.mxu0 0
    %325 = vmatpush1.bf16.msra.mxu0 0
    %326 = vmatprep.subr.bf16.mxu0 0
    %327 = vmatpush1.bf16.msra.mxu0 0
    %328 = vmatprep.subr.bf16.mxu0 0
    %329 = vmatpush1.bf16.msra.mxu0 0
    %330 = vmatprep.subr.bf16.mxu0 0
    %331 = vmatpush1.bf16.msra.mxu0 0
    %332 = vmatprep.subr.bf16.mxu0 0
    %333 = vmatpush1.bf16.msra.mxu0 0
    %334 = vmatprep.subr.bf16.mxu0 0
    %335 = vmatpush1.bf16.msra.mxu0 0
    %336 = vmatprep.subr.bf16.mxu0 0
    %337 = vmatpush1.bf16.msra.mxu0 0
    %338 = vmatprep.mubr.bf16.mxu0 0
    %339 = vmatmul.mubr.bf16.gmra.mrb[0].mxu0 %v153
    %v340 = vpop.f32.mrb[0].mxu0
    %v341 = vadd.f32 %v292, %v340
    %v342 = vpop.f32.mrb[0].mxu0
    %v343 = vpop.f32.mrb[0].mxu0
    %v344 = vadd.f32 %v292, %v343
    %v345 = vpop.f32.mrb[0].mxu0
    %346 = vdwg.mxu0
    %v347 = vpack.c.bf16 %v344, %v341
    %v349 = vunpack.c.l.b16 %v347
    %v350 = vunpack.c.h.b16 %v347
    %v351 = vpack.c.b16 %v349, %v349
    %v352 = vpack.c.b16 %v350, %v350
    %355 = vst.msk [vmem:[#allocation17] sm:$0xf] %vm206, %v351
    %356 = vst.msk [vmem:[#allocation17 + $0x4] sm:$0xf] %vm206, %v352
    // Predicated region
    $region58: #{tpu_custom_call.1} parent=1 // pred_check
      _
    $region59: #{tpu_custom_call.1} parent=1 // pred_check_branch
      %358 = sbr.rel (0) target = $region61
    $region60: #{tpu_custom_call.1} parent=1 // pred_region
      %s360 = ssub.s32 128, 128
      %361 = vsyncadd [#allocation4], %s360
      %s362 = sshll.u32 [#allocation14], 4
      %s363 = int_to_ptr.vmem [resolvable:$true] %s362
      %368 = dma.vmem_to_hbm [thread:$0]  %s363, 128, %s7, [#allocation4], 64, 64, 4
    $region61: #{tpu_custom_call.1} parent=1 // pred_fallthru
      _
    // Predicated region
    $region62: #{tpu_custom_call.1} parent=1 // pred_check
      _
    $region63: #{tpu_custom_call.1} parent=1 // pred_check_branch
      %370 = sbr.rel (0) target = $region65
    $region64: #{tpu_custom_call.1} parent=1 // pred_region
      %s372 = ssub.s32 128, 128
      %373 = vsyncadd [#allocation16], %s372
      %s374 = sshll.u32 [#allocation15], 4
      %s375 = int_to_ptr.vmem [resolvable:$true] %s374
      %380 = dma.vmem_to_hbm [thread:$0]  %s375, 128, %s8, [#allocation16], 64, 64, 4
    $region65: #{tpu_custom_call.1} parent=1 // pred_fallthru
      _
    // Predicated region
    $region66: #{tpu_custom_call.1} parent=1 // pred_check
      _
    $region67: #{tpu_custom_call.1} parent=1 // pred_check_branch
      %382 = sbr.rel (0) target = $region69
    $region68: #{tpu_custom_call.1} parent=1 // pred_region
      %s384 = ssub.s32 128, 128
      %385 = vsyncadd [#allocation16], %s384
      %s386 = sshll.u32 [#allocation17], 4
      %s387 = int_to_ptr.vmem [resolvable:$true] %s386
      %392 = dma.vmem_to_hbm [thread:$0]  %s387, 128, %s9, [#allocation16], 64, 64, 4
    $region69: #{tpu_custom_call.1} parent=1 // pred_fallthru
      _
    // Predicated region
    $region70: #{tpu_custom_call.1} parent=1 // pred_check
      _
    $region71: #{tpu_custom_call.1} parent=1 // pred_check_branch
      %394 = sbr.rel (0) target = $region73
    $region72: #{tpu_custom_call.1} parent=1 // pred_region
      %395 = dma.done [#allocation4], 128
    $region73: #{tpu_custom_call.1} parent=1 // pred_fallthru
      _
    // Predicated region
    $region74: #{tpu_custom_call.1} parent=1 // pred_check
      _
    $region75: #{tpu_custom_call.1} parent=1 // pred_check_branch
      %397 = sbr.rel (0) target = $region77
    $region76: #{tpu_custom_call.1} parent=1 // pred_region
      %398 = dma.done [#allocation16], 128
    $region77: #{tpu_custom_call.1} parent=1 // pred_fallthru
      _
    // Predicated region
    $region78: #{tpu_custom_call.1} parent=1 // pred_check
      _
    $region79: #{tpu_custom_call.1} parent=1 // pred_check_branch
      %400 = sbr.rel (0) target = $region81
    $region80: #{tpu_custom_call.1} parent=1 // pred_region
      %401 = dma.done [#allocation16], 128
    $region81: #{tpu_custom_call.1} parent=1 // pred_fallthru
      _
    %402 = vsyncpa [#allocation3], 1
    %403 = vsyncpa [#allocation6], 1
    %404 = vsyncpa [#allocation9], 1
    %405 = vsyncpa [#allocation12], 1
    %406 = vsyncpa [#allocation4], 1
    %407 = vsyncpa [#allocation16], 1

</llo_original>
